<compile_context>
chip_gen: v5e
topology: v5e:2x2
jax: 0.10.0
libtpu: 0.0.40
codegen_flags: <defaults>
</compile_context>

<pallas_src>
import functools

import jax
import jax.numpy as jnp
from jax.experimental import pallas as pl
from jax.experimental.pallas import tpu as pltpu

IN_FEATURES = 1000
HIDDEN = 128
DROP_P = 0.4
NEG_SLOPE = 0.2


def _round_up(x, m):
    return ((x + m - 1) // m) * m


def _leaky_relu(x, negative_slope=NEG_SLOPE):
    return jnp.where(x >= 0, x, negative_slope * x)


def _encoder_kernel(delta_ref, w1_ref, b1_ref, w2_ref, b2_ref, *rest,
                    training: bool):
    if training:
        mask1_ref, mask2_ref, out_ref = rest
    else:
        (out_ref,) = rest

    # fc1: (TB, 1000) f32 read -> bf16 cast in-register, bf16 MXU dot, f32 acc.
    h = jnp.dot(delta_ref[...].astype(jnp.bfloat16),
                w1_ref[...].astype(jnp.bfloat16),
                preferred_element_type=jnp.float32) + b1_ref[...]
    h = _leaky_relu(h)
    if training:
        # mask is the pre-scaled inverted-dropout factor (0 or 1/(1-p)).
        h = h * mask1_ref[...]

    # fc2: (TB, 128) bf16 @ (128, mu_dim) bf16 -> f32 acc, + bias.
    z = jnp.dot(h.astype(jnp.bfloat16),
                w2_ref[...].astype(jnp.bfloat16),
                preferred_element_type=jnp.float32) + b2_ref[...]
    z = _leaky_relu(z)
    if training:
        z = z * mask2_ref[...]

    # Lane-dense (TB, mu_dim) output; the num_imgs repeat is a free broadcast
    # in the wrapper.
    out_ref[...] = z.astype(out_ref.dtype)


def encoder_forward(delta, w1, b1, w2, b2, *, num_imgs, training=False,
                    dropout_rng=None, block_b=1024):
    """delta: (B, 1000) float32.  Returns mu: (B, num_imgs, mu_dim) float32."""
    B, K = delta.shape
    Kw, H = w1.shape
    assert Kw == K
    mu_dim = w2.shape[1]

    # --- batch tiling -----------------------------------------------------
    B8 = _round_up(B, 8)
    TB = _round_up(min(int(block_b), B8), 8)
    # v7x has 2 TensorCores per chip: make sure there are >= 2 parallel batch
    # tiles whenever the batch is big enough, so the grid can shard across TCs.
    if pl.cdiv(B8, TB) < 2 and B8 >= 16:
        TB = _round_up(pl.cdiv(B8, 2), 8)
    grid_b = pl.cdiv(B, TB)
    # No wrapper-side padding of delta: boundary blocks are handled by Pallas
    # (OOB rows produce garbage rows that are never stored — each output row
    # depends only on its own delta row).

    delta_f32 = delta.astype(jnp.float32)
    w1_f = w1.astype(jnp.float32)
    w2_f = w2.astype(jnp.float32)
    b1_f = b1.reshape(1, H).astype(jnp.float32)
    b2_f = b2.reshape(1, mu_dim).astype(jnp.float32)

    in_specs = [
        pl.BlockSpec((TB, K), lambda i: (i, 0)),       # delta tile (f32, full K)
        pl.BlockSpec((K, H), lambda i: (0, 0)),        # w1 (VMEM-resident)
        pl.BlockSpec((1, H), lambda i: (0, 0)),        # b1 (resident)
        pl.BlockSpec((H, mu_dim), lambda i: (0, 0)),   # w2 (resident)
        pl.BlockSpec((1, mu_dim), lambda i: (0, 0)),   # b2 (resident)
    ]
    operands = [delta_f32, w1_f, b1_f, w2_f, b2_f]

    if training:
        if dropout_rng is None:
            dropout_rng = jax.random.PRNGKey(0)
        k1, k2 = jax.random.split(dropout_rng)
        keep_p = 1.0 - DROP_P
        # Inverted-dropout scale tensors: 0 (dropped) or 1/keep_p (kept).
        m1 = jax.random.bernoulli(k1, keep_p, (B, H)).astype(jnp.float32) / keep_p
        m2 = jax.random.bernoulli(k2, keep_p, (B, mu_dim)).astype(jnp.float32) / keep_p
        in_specs += [
            pl.BlockSpec((TB, H), lambda i: (i, 0)),
            pl.BlockSpec((TB, mu_dim), lambda i: (i, 0)),
        ]
        operands += [m1, m2]

    kernel = functools.partial(_encoder_kernel, training=training)

    z = pl.pallas_call(
        kernel,
        out_shape=jax.ShapeDtypeStruct((B, mu_dim), jnp.float32),
        grid_spec=pltpu.PrefetchScalarGridSpec(
            num_scalar_prefetch=0,
            grid=(grid_b,),
            in_specs=in_specs,
            out_specs=pl.BlockSpec((TB, mu_dim), lambda i: (i, 0)),
        ),
        compiler_params=pltpu.CompilerParams(
            # Batch tiles are independent -> shard across TCs on v7x.
            dimension_semantics=("parallel",),
            # Explicit scoped-VMEM budget: double-buffered (TB, 1000) f32 delta
            # tiles (~8 MiB at TB=1024) + residents fit easily, with headroom
            # for larger block_b.  Under v7x's 64 MiB physical VMEM.
            vmem_limit_bytes=48 * 1024 * 1024,
        ),
    )(*operands)

    # reshape(-1, 1, mu_dim) + repeat(1, num_imgs, 1) == broadcast over axis 1.
    return jnp.broadcast_to(z[:, None, :], (B, num_imgs, mu_dim))


def init_encoder_params(key, mu_dim, in_features=IN_FEATURES, hidden=HIDDEN):
    """Deterministic init mimicking torch.nn.Linear (U[-1/sqrt(fan_in), +])."""
    k1, k2, k3, k4 = jax.random.split(key, 4)
    lim1 = 1.0 / jnp.sqrt(in_features)
    lim2 = 1.0 / jnp.sqrt(hidden)
    w1 = jax.random.uniform(k1, (in_features, hidden), jnp.float32, -lim1, lim1)
    b1 = jax.random.uniform(k2, (1, hidden), jnp.float32, -lim1, lim1)
    w2 = jax.random.uniform(k3, (hidden, mu_dim), jnp.float32, -lim2, lim2)
    b2 = jax.random.uniform(k4, (1, mu_dim), jnp.float32, -lim2, lim2)
    return w1, b1, w2, b2


def encoder_reference_eval(delta, w1, b1, w2, b2, num_imgs):
    """Pure-JAX f32 reference (eval mode: dropout is identity)."""
    h = _leaky_relu(delta @ w1 + b1)
    z = _leaky_relu(h @ w2 + b2)
    mu = z.reshape(-1, 1, z.shape[-1])
    return jnp.broadcast_to(mu, (mu.shape[0], num_imgs, mu.shape[-1]))


if __name__ == "__main__":
    B = 8
    MU_DIM = 32
    NUM_IMGS = 4

    key = jax.random.PRNGKey(0)
    k_delta, k_params, k_drop = jax.random.split(key, 3)

    delta = jax.random.normal(k_delta, (B, IN_FEATURES), jnp.float32)
    w1, b1, w2, b2 = init_encoder_params(k_params, MU_DIM, IN_FEATURES, HIDDEN)

    # Eval-mode forward (deterministic; dropout is identity).
    mu = encoder_forward(delta, w1, b1, w2, b2,
                         num_imgs=NUM_IMGS, training=False)
    mu = jax.block_until_ready(mu)

    ref = encoder_reference_eval(delta, w1, b1, w2, b2, NUM_IMGS)
    assert mu.shape == (B, NUM_IMGS, MU_DIM), mu.shape
    # bf16 matmul operands with f32 accumulation -> small numerics delta vs f32.
    assert jnp.allclose(mu, ref, atol=5e-2, rtol=5e-2), "mismatch vs reference"

    # Training-mode path (stochastic inverted dropout; compile/run coverage).
    mu_train = encoder_forward(delta, w1, b1, w2, b2,
                               num_imgs=NUM_IMGS, training=True,
                               dropout_rng=k_drop)
    mu_train = jax.block_until_ready(mu_train)
    assert mu_train.shape == (B, NUM_IMGS, MU_DIM)
    assert bool(jnp.all(jnp.isfinite(mu_train)))

    print("KERNEL_OK")
</pallas_src>

<mosaic_0001>
module attributes {stable_mosaic.version = 11 : i64} {
  func.func @_encoder_kernel(%arg0: i32, %arg1: memref<8x1000xf32, #tpu.memory_space<vmem>>, %arg2: memref<1000x128xf32, #tpu.memory_space<vmem>>, %arg3: memref<1x128xf32, #tpu.memory_space<vmem>>, %arg4: memref<128x32xf32, #tpu.memory_space<vmem>>, %arg5: memref<1x32xf32, #tpu.memory_space<vmem>>, %arg6: memref<8x32xf32, #tpu.memory_space<vmem>>) attributes {dimension_semantics = [#tpu.dimension_semantics<parallel>], iteration_bounds = array<i64: 1>, scalar_prefetch = 0 : i64, scratch_operands = 0 : i64, tpu.core_type = #tpu.core_type<tc>, window_params = [{transform_indices = @transform_0, window_bounds = array<i64: 8, 1000>}, {pipeline_mode = #tpu.pipeline_mode<synchronous>, transform_indices = @transform_1, window_bounds = array<i64: 1000, 128>}, {pipeline_mode = #tpu.pipeline_mode<synchronous>, transform_indices = @transform_2, window_bounds = array<i64: 1, 128>}, {pipeline_mode = #tpu.pipeline_mode<synchronous>, transform_indices = @transform_3, window_bounds = array<i64: 128, 32>}, {pipeline_mode = #tpu.pipeline_mode<synchronous>, transform_indices = @transform_4, window_bounds = array<i64: 1, 32>}, {transform_indices = @transform_5, window_bounds = array<i64: 8, 32>}]} {
    %c0 = arith.constant 0 : index
    %c0_0 = arith.constant 0 : index
    %0 = vector.load %arg1[%c0, %c0_0] : memref<8x1000xf32, #tpu.memory_space<vmem>>, vector<8x1000xf32>
    %1 = arith.truncf %0 : vector<8x1000xf32> to vector<8x1000xbf16>
    %c0_1 = arith.constant 0 : index
    %c0_2 = arith.constant 0 : index
    %2 = vector.load %arg2[%c0_1, %c0_2] : memref<1000x128xf32, #tpu.memory_space<vmem>>, vector<1000x128xf32>
    %3 = arith.truncf %2 : vector<1000x128xf32> to vector<1000x128xbf16>
    %cst = arith.constant dense<0.000000e+00> : vector<8x128xf32>
    %4 = tpu.matmul %1, %3, %cst {dimension_numbers = #tpu.dot_dimension_numbers<[1], [0], [0], [1], [0, 0, 1, 1], [], []>} : vector<8x1000xbf16>, vector<1000x128xbf16>, vector<8x128xf32> -> vector<8x128xf32>
    %c0_3 = arith.constant 0 : index
    %c0_4 = arith.constant 0 : index
    %5 = vector.load %arg3[%c0_3, %c0_4] : memref<1x128xf32, #tpu.memory_space<vmem>>, vector<1x128xf32>
    %6 = vector.broadcast %5 : vector<1x128xf32> to vector<8x128xf32>
    %7 = arith.addf %4, %6 : vector<8x128xf32>
    %cst_5 = arith.constant 0.000000e+00 : f32
    %8 = vector.broadcast %cst_5 : f32 to vector<8x128xf32>
    %9 = arith.cmpf oge, %7, %8 : vector<8x128xf32>
    %cst_6 = arith.constant 2.000000e-01 : f32
    %10 = vector.broadcast %cst_6 : f32 to vector<8x128xf32>
    %11 = arith.mulf %10, %7 : vector<8x128xf32>
    %12 = arith.select %9, %7, %11 : vector<8x128xi1>, vector<8x128xf32>
    %13 = arith.truncf %12 : vector<8x128xf32> to vector<8x128xbf16>
    %c0_7 = arith.constant 0 : index
    %c0_8 = arith.constant 0 : index
    %14 = vector.load %arg4[%c0_7, %c0_8] : memref<128x32xf32, #tpu.memory_space<vmem>>, vector<128x32xf32>
    %15 = arith.truncf %14 : vector<128x32xf32> to vector<128x32xbf16>
    %cst_9 = arith.constant dense<0.000000e+00> : vector<8x32xf32>
    %16 = tpu.matmul %13, %15, %cst_9 {dimension_numbers = #tpu.dot_dimension_numbers<[1], [0], [0], [1], [0, 0, 1, 1], [], []>} : vector<8x128xbf16>, vector<128x32xbf16>, vector<8x32xf32> -> vector<8x32xf32>
    %c0_10 = arith.constant 0 : index
    %c0_11 = arith.constant 0 : index
    %17 = vector.load %arg5[%c0_10, %c0_11] : memref<1x32xf32, #tpu.memory_space<vmem>>, vector<1x32xf32>
    %18 = vector.broadcast %17 : vector<1x32xf32> to vector<8x32xf32>
    %19 = arith.addf %16, %18 : vector<8x32xf32>
    %cst_12 = arith.constant 0.000000e+00 : f32
    %20 = vector.broadcast %cst_12 : f32 to vector<8x32xf32>
    %21 = arith.cmpf oge, %19, %20 : vector<8x32xf32>
    %cst_13 = arith.constant 2.000000e-01 : f32
    %22 = vector.broadcast %cst_13 : f32 to vector<8x32xf32>
    %23 = arith.mulf %22, %19 : vector<8x32xf32>
    %24 = arith.select %21, %19, %23 : vector<8x32xi1>, vector<8x32xf32>
    %c0_14 = arith.constant 0 : index
    %c0_15 = arith.constant 0 : index
    %25 = vector.load %arg6[%c0_14, %c0_15] : memref<8x32xf32, #tpu.memory_space<vmem>>, vector<8x32xf32>
    tpu.vector_store %arg6[%c0_14, %c0_15], %24 {strides = array<i32>} : memref<8x32xf32, #tpu.memory_space<vmem>>, vector<8x32xf32>,
    return
  }
  func.func @transform_0(%arg0: i32) -> (i32, i32) {
    %c0_i32 = arith.constant 0 : i32
    %c0_i32_0 = arith.constant 0 : i32
    return %arg0, %c0_i32 : i32, i32
  }
  func.func @transform_1(%arg0: i32) -> (i32, i32) {
    %c0_i32 = arith.constant 0 : i32
    %c0_i32_0 = arith.constant 0 : i32
    %c0_i32_1 = arith.constant 0 : i32
    return %c0_i32, %c0_i32_0 : i32, i32
  }
  func.func @transform_2(%arg0: i32) -> (i32, i32) {
    %c0_i32 = arith.constant 0 : i32
    %c0_i32_0 = arith.constant 0 : i32
    %c0_i32_1 = arith.constant 0 : i32
    return %c0_i32, %c0_i32_0 : i32, i32
  }
  func.func @transform_3(%arg0: i32) -> (i32, i32) {
    %c0_i32 = arith.constant 0 : i32
    %c0_i32_0 = arith.constant 0 : i32
    %c0_i32_1 = arith.constant 0 : i32
    return %c0_i32, %c0_i32_0 : i32, i32
  }
  func.func @transform_4(%arg0: i32) -> (i32, i32) {
    %c0_i32 = arith.constant 0 : i32
    %c0_i32_0 = arith.constant 0 : i32
    %c0_i32_1 = arith.constant 0 : i32
    return %c0_i32, %c0_i32_0 : i32, i32
  }
  func.func @transform_5(%arg0: i32) -> (i32, i32) {
    %c0_i32 = arith.constant 0 : i32
    %c0_i32_0 = arith.constant 0 : i32
    return %arg0, %c0_i32 : i32, i32
  }
}

</mosaic_0001>

<llo_original>
// kernel: tpu_custom_call.1
$region0: #{tpu_custom_call.1}
  #allocation0 [shape = 'u32[]', space=smem, size = 0x4, offset = 0x4, fixed_abs, tag = 'smem constant byte address 0x4 - core index']
  #allocation1 [shape = 'u32[72,128]{1,0:T(1,128)}', space=vmem, size = 0x9000, scoped, tag = 'internal scratch']
  %s0 = inlined_call_operand.vmem [shape: f32[8,1000], index: 0, kind: input, shape index: {}]
  %s1 = inlined_call_operand.hbm [shape: f32[1000,128], index: 1, kind: input, shape index: {}]
  %s2 = inlined_call_operand.vmem [shape: f32[1,128], index: 2, kind: input, shape index: {}]
  %s3 = inlined_call_operand.vmem [shape: f32[128,32], index: 3, kind: input, shape index: {}]
  %s4 = inlined_call_operand.vmem [shape: f32[1,32], index: 4, kind: input, shape index: {}]
  %s5 = inlined_call_operand.hbm [shape: f32[8,32], index: 5, kind: output, shape index: {}]
  %s6 = sld [smem:[#allocation0]]
  $region34: #{tpu_custom_call.1} parent=0
    _
  %s8 = ssub.s32 1, %s6
  %s9 = scalar_select 0, %s8, %s6
  $region1: #{tpu_custom_call.1} parent=0
    #allocation2 [shape = 'u8[512000]{0}', space=vmem, size = 0x7d000, scoped, tag = 'input window, operand 1, single buffered']
    #allocation3 [shape = 's32[1]{0}', space=sflag, size = 0x4, scoped, tag = 'scoped memory for tpu_custom_call.1']
    #allocation4 [shape = 's32[1]{0}', space=sflag, size = 0x4, scoped, tag = 'scoped memory for tpu_custom_call.1']
    #allocation5 [shape = 'u8[4096]{0}', space=vmem, size = 0x1000, scoped, tag = 'output window, operand 0, single buffered']
    %10 = vsyncpa [#allocation3], 0
    %11 = vsyncpa [#allocation4], 0
    // Predicated region
    $region2: #{tpu_custom_call.1} parent=1 // pred_check
      _
    $region3: #{tpu_custom_call.1} parent=1 // pred_check_branch
      %13 = sbr.rel (0) target = $region5
    $region4: #{tpu_custom_call.1} parent=1 // pred_region
      _
    $region5: #{tpu_custom_call.1} parent=1 // pred_fallthru
      _
    // Predicated region
    $region6: #{tpu_custom_call.1} parent=1 // pred_check
      _
    $region7: #{tpu_custom_call.1} parent=1 // pred_check_branch
      %15 = sbr.rel (0) target = $region9
    $region8: #{tpu_custom_call.1} parent=1 // pred_region
      %17 = vsyncadd [#allocation3], 0
      %s18 = sshll.u32 %s1, 4
      %s19 = int_to_ptr.hbm [resolvable:$true] %s18
      %s20 = sshll.u32 [#allocation2], 4
      %s21 = int_to_ptr.vmem [resolvable:$true] %s20
      %26 = dma.hbm_to_vmem [thread:$0]  %s19, 16000, %s21, [#allocation3], 128, 128, 8
    $region9: #{tpu_custom_call.1} parent=1 // pred_fallthru
      _
    // Predicated region
    $region10: #{tpu_custom_call.1} parent=1 // pred_check
      _
    $region11: #{tpu_custom_call.1} parent=1 // pred_check_branch
      %28 = sbr.rel (0) target = $region13
    $region12: #{tpu_custom_call.1} parent=1 // pred_region
      _
    $region13: #{tpu_custom_call.1} parent=1 // pred_fallthru
      _
    // Predicated region
    $region14: #{tpu_custom_call.1} parent=1 // pred_check
      _
    $region15: #{tpu_custom_call.1} parent=1 // pred_check_branch
      %30 = sbr.rel (0) target = $region17
    $region16: #{tpu_custom_call.1} parent=1 // pred_region
      _
    $region17: #{tpu_custom_call.1} parent=1 // pred_fallthru
      _
    // Predicated region
    $region18: #{tpu_custom_call.1} parent=1 // pred_check
      _
    $region19: #{tpu_custom_call.1} parent=1 // pred_check_branch
      %32 = sbr.rel (0) target = $region21
    $region20: #{tpu_custom_call.1} parent=1 // pred_region
      _
    $region21: #{tpu_custom_call.1} parent=1 // pred_fallthru
      _
    // Predicated region
    $region22: #{tpu_custom_call.1} parent=1 // pred_check
      _
    $region23: #{tpu_custom_call.1} parent=1 // pred_check_branch
      %34 = sbr.rel (0) target = $region25
    $region24: #{tpu_custom_call.1} parent=1 // pred_region
      %36 = dma.done [#allocation3], 16000
    $region25: #{tpu_custom_call.1} parent=1 // pred_fallthru
      _
    %v38 = vld [vmem:[%s0] sm:$0xff]
    %v39 = vld [vmem:[%s0 + $0x8] sm:$0xff]
    %v40 = vld [vmem:[%s0 + $0x10] sm:$0xff]
    %v41 = vld [vmem:[%s0 + $0x18] sm:$0xff]
    %v42 = vld [vmem:[%s0 + $0x20] sm:$0xff]
    %v43 = vld [vmem:[%s0 + $0x28] sm:$0xff]
    %v44 = vld [vmem:[%s0 + $0x30] sm:$0xff]
    %v45 = vld [vmem:[%s0 + $0x38] sm:$0xff]
    %v46 = vpack.c.bf16 %v38, %v38
    %v47 = vpack.c.bf16 %v39, %v39
    %v48 = vpack.c.bf16 %v40, %v40
    %v49 = vpack.c.bf16 %v41, %v41
    %v50 = vpack.c.bf16 %v42, %v42
    %v51 = vpack.c.bf16 %v43, %v43
    %v52 = vpack.c.bf16 %v44, %v44
    %v53 = vpack.c.bf16 %v45, %v45
    %v54 = vld [vmem:[#allocation2] sm:$0xff]
    %v55 = vld [vmem:[#allocation2 + $0x8] sm:$0xff]
    %v56 = vld [vmem:[#allocation2 + $0x10] sm:$0xff]
    %v57 = vld [vmem:[#allocation2 + $0x18] sm:$0xff]
    %v58 = vld [vmem:[#allocation2 + $0x20] sm:$0xff]
    %v59 = vld [vmem:[#allocation2 + $0x28] sm:$0xff]
    %v60 = vld [vmem:[#allocation2 + $0x30] sm:$0xff]
    %v61 = vld [vmem:[#allocation2 + $0x38] sm:$0xff]
    %v62 = vld [vmem:[#allocation2 + $0x40] sm:$0xff]
    %v63 = vld [vmem:[#allocation2 + $0x48] sm:$0xff]
    %v64 = vld [vmem:[#allocation2 + $0x50] sm:$0xff]
    %v65 = vld [vmem:[#allocation2 + $0x58] sm:$0xff]
    %v66 = vld [vmem:[#allocation2 + $0x60] sm:$0xff]
    %v67 = vld [vmem:[#allocation2 + $0x68] sm:$0xff]
    %v68 = vld [vmem:[#allocation2 + $0x70] sm:$0xff]
    %v69 = vld [vmem:[#allocation2 + $0x78] sm:$0xff]
    %v70 = vld [vmem:[#allocation2 + $0x80] sm:$0xff]
    %v71 = vld [vmem:[#allocation2 + $0x88] sm:$0xff]
    %v72 = vld [vmem:[#allocation2 + $0x90] sm:$0xff]
    %v73 = vld [vmem:[#allocation2 + $0x98] sm:$0xff]
    %v74 = vld [vmem:[#allocation2 + $0xa0] sm:$0xff]
    %v75 = vld [vmem:[#allocation2 + $0xa8] sm:$0xff]
    %v76 = vld [vmem:[#allocation2 + $0xb0] sm:$0xff]
    %v77 = vld [vmem:[#allocation2 + $0xb8] sm:$0xff]
    %v78 = vld [vmem:[#allocation2 + $0xc0] sm:$0xff]
    %v79 = vld [vmem:[#allocation2 + $0xc8] sm:$0xff]
    %v80 = vld [vmem:[#allocation2 + $0xd0] sm:$0xff]
    %v81 = vld [vmem:[#allocation2 + $0xd8] sm:$0xff]
    %v82 = vld [vmem:[#allocation2 + $0xe0] sm:$0xff]
    %v83 = vld [vmem:[#allocation2 + $0xe8] sm:$0xff]
    %v84 = vld [vmem:[#allocation2 + $0xf0] sm:$0xff]
    %v85 = vld [vmem:[#allocation2 + $0xf8] sm:$0xff]
    %v86 = vld [vmem:[#allocation2 + $0x100] sm:$0xff]
    %v87 = vld [vmem:[#allocation2 + $0x108] sm:$0xff]
    %v88 = vld [vmem:[#allocation2 + $0x110] sm:$0xff]
    %v89 = vld [vmem:[#allocation2 + $0x118] sm:$0xff]
    %v90 = vld [vmem:[#allocation2 + $0x120] sm:$0xff]
    %v91 = vld [vmem:[#allocation2 + $0x128] sm:$0xff]
    %v92 = vld [vmem:[#allocation2 + $0x130] sm:$0xff]
    %v93 = vld [vmem:[#allocation2 + $0x138] sm:$0xff]
    %v94 = vld [vmem:[#allocation2 + $0x140] sm:$0xff]
    %v95 = vld [vmem:[#allocation2 + $0x148] sm:$0xff]
    %v96 = vld [vmem:[#allocation2 + $0x150] sm:$0xff]
    %v97 = vld [vmem:[#allocation2 + $0x158] sm:$0xff]
    %v98 = vld [vmem:[#allocation2 + $0x160] sm:$0xff]
    %v99 = vld [vmem:[#allocation2 + $0x168] sm:$0xff]
    %v100 = vld [vmem:[#allocation2 + $0x170] sm:$0xff]
    %v101 = vld [vmem:[#allocation2 + $0x178] sm:$0xff]
    %v102 = vld [vmem:[#allocation2 + $0x180] sm:$0xff]
    %v103 = vld [vmem:[#allocation2 + $0x188] sm:$0xff]
    %v104 = vld [vmem:[#allocation2 + $0x190] sm:$0xff]
    %v105 = vld [vmem:[#allocation2 + $0x198] sm:$0xff]
    %v106 = vld [vmem:[#allocation2 + $0x1a0] sm:$0xff]
    %v107 = vld [vmem:[#allocation2 + $0x1a8] sm:$0xff]
    %v108 = vld [vmem:[#allocation2 + $0x1b0] sm:$0xff]
    %v109 = vld [vmem:[#allocation2 + $0x1b8] sm:$0xff]
    %v110 = vld [vmem:[#allocation2 + $0x1c0] sm:$0xff]
    %v111 = vld [vmem:[#allocation2 + $0x1c8] sm:$0xff]
    %v112 = vld [vmem:[#allocation2 + $0x1d0] sm:$0xff]
    %v113 = vld [vmem:[#allocation2 + $0x1d8] sm:$0xff]
    %v114 = vld [vmem:[#allocation2 + $0x1e0] sm:$0xff]
    %v115 = vld [vmem:[#allocation2 + $0x1e8] sm:$0xff]
    %v116 = vld [vmem:[#allocation2 + $0x1f0] sm:$0xff]
    %v117 = vld [vmem:[#allocation2 + $0x1f8] sm:$0xff]
    %v118 = vld [vmem:[#allocation2 + $0x200] sm:$0xff]
    %v119 = vld [vmem:[#allocation2 + $0x208] sm:$0xff]
    %v120 = vld [vmem:[#allocation2 + $0x210] sm:$0xff]
    %v121 = vld [vmem:[#allocation2 + $0x218] sm:$0xff]
    %v122 = vld [vmem:[#allocation2 + $0x220] sm:$0xff]
    %v123 = vld [vmem:[#allocation2 + $0x228] sm:$0xff]
    %v124 = vld [vmem:[#allocation2 + $0x230] sm:$0xff]
    %v125 = vld [vmem:[#allocation2 + $0x238] sm:$0xff]
    %v126 = vld [vmem:[#allocation2 + $0x240] sm:$0xff]
    %v127 = vld [vmem:[#allocation2 + $0x248] sm:$0xff]
    %v128 = vld [vmem:[#allocation2 + $0x250] sm:$0xff]
    %v129 = vld [vmem:[#allocation2 + $0x258] sm:$0xff]
    %v130 = vld [vmem:[#allocation2 + $0x260] sm:$0xff]
    %v131 = vld [vmem:[#allocation2 + $0x268] sm:$0xff]
    %v132 = vld [vmem:[#allocation2 + $0x270] sm:$0xff]
    %v133 = vld [vmem:[#allocation2 + $0x278] sm:$0xff]
    %v134 = vld [vmem:[#allocation2 + $0x280] sm:$0xff]
    %v135 = vld [vmem:[#allocation2 + $0x288] sm:$0xff]
    %v136 = vld [vmem:[#allocation2 + $0x290] sm:$0xff]
    %v137 = vld [vmem:[#allocation2 + $0x298] sm:$0xff]
    %v138 = vld [vmem:[#allocation2 + $0x2a0] sm:$0xff]
    %v139 = vld [vmem:[#allocation2 + $0x2a8] sm:$0xff]
    %v140 = vld [vmem:[#allocation2 + $0x2b0] sm:$0xff]
    %v141 = vld [vmem:[#allocation2 + $0x2b8] sm:$0xff]
    %v142 = vld [vmem:[#allocation2 + $0x2c0] sm:$0xff]
    %v143 = vld [vmem:[#allocation2 + $0x2c8] sm:$0xff]
    %v144 = vld [vmem:[#allocation2 + $0x2d0] sm:$0xff]
    %v145 = vld [vmem:[#allocation2 + $0x2d8] sm:$0xff]
    %v146 = vld [vmem:[#allocation2 + $0x2e0] sm:$0xff]
    %v147 = vld [vmem:[#allocation2 + $0x2e8] sm:$0xff]
    %v148 = vld [vmem:[#allocation2 + $0x2f0] sm:$0xff]
    %v149 = vld [vmem:[#allocation2 + $0x2f8] sm:$0xff]
    %v150 = vld [vmem:[#allocation2 + $0x300] sm:$0xff]
    %v151 = vld [vmem:[#allocation2 + $0x308] sm:$0xff]
    %v152 = vld [vmem:[#allocation2 + $0x310] sm:$0xff]
    %v153 = vld [vmem:[#allocation2 + $0x318] sm:$0xff]
    %v154 = vld [vmem:[#allocation2 + $0x320] sm:$0xff]
    %v155 = vld [vmem:[#allocation2 + $0x328] sm:$0xff]
    %v156 = vld [vmem:[#allocation2 + $0x330] sm:$0xff]
    %v157 = vld [vmem:[#allocation2 + $0x338] sm:$0xff]
    %v158 = vld [vmem:[#allocation2 + $0x340] sm:$0xff]
    %v159 = vld [vmem:[#allocation2 + $0x348] sm:$0xff]
    %v160 = vld [vmem:[#allocation2 + $0x350] sm:$0xff]
    %v161 = vld [vmem:[#allocation2 + $0x358] sm:$0xff]
    %v162 = vld [vmem:[#allocation2 + $0x360] sm:$0xff]
    %v163 = vld [vmem:[#allocation2 + $0x368] sm:$0xff]
    %v164 = vld [vmem:[#allocation2 + $0x370] sm:$0xff]
    %v165 = vld [vmem:[#allocation2 + $0x378] sm:$0xff]
    %v166 = vld [vmem:[#allocation2 + $0x380] sm:$0xff]
    %v167 = vld [vmem:[#allocation2 + $0x388] sm:$0xff]
    %v168 = vld [vmem:[#allocation2 + $0x390] sm:$0xff]
    %v169 = vld [vmem:[#allocation2 + $0x398] sm:$0xff]
    %v170 = vld [vmem:[#allocation2 + $0x3a0] sm:$0xff]
    %v171 = vld [vmem:[#allocation2 + $0x3a8] sm:$0xff]
    %v172 = vld [vmem:[#allocation2 + $0x3b0] sm:$0xff]
    %v173 = vld [vmem:[#allocation2 + $0x3b8] sm:$0xff]
    %v174 = vld [vmem:[#allocation2 + $0x3c0] sm:$0xff]
    %v175 = vld [vmem:[#allocation2 + $0x3c8] sm:$0xff]
    %v176 = vld [vmem:[#allocation2 + $0x3d0] sm:$0xff]
    %v177 = vld [vmem:[#allocation2 + $0x3d8] sm:$0xff]
    %v178 = vld [vmem:[#allocation2 + $0x3e0] sm:$0xff]
    %v179 = vpack.c.bf16 %v55, %v54
    %v180 = vpack.c.bf16 %v57, %v56
    %v181 = vpack.c.bf16 %v59, %v58
    %v182 = vpack.c.bf16 %v61, %v60
    %v183 = vpack.c.bf16 %v63, %v62
    %v184 = vpack.c.bf16 %v65, %v64
    %v185 = vpack.c.bf16 %v67, %v66
    %v186 = vpack.c.bf16 %v69, %v68
    %v187 = vpack.c.bf16 %v71, %v70
    %v188 = vpack.c.bf16 %v73, %v72
    %v189 = vpack.c.bf16 %v75, %v74
    %v190 = vpack.c.bf16 %v77, %v76
    %v191 = vpack.c.bf16 %v79, %v78
    %v192 = vpack.c.bf16 %v81, %v80
    %v193 = vpack.c.bf16 %v83, %v82
    %v194 = vpack.c.bf16 %v85, %v84
    %v195 = vpack.c.bf16 %v87, %v86
    %v196 = vpack.c.bf16 %v89, %v88
    %v197 = vpack.c.bf16 %v91, %v90
    %v198 = vpack.c.bf16 %v93, %v92
    %v199 = vpack.c.bf16 %v95, %v94
    %v200 = vpack.c.bf16 %v97, %v96
    %v201 = vpack.c.bf16 %v99, %v98
    %v202 = vpack.c.bf16 %v101, %v100
    %v203 = vpack.c.bf16 %v103, %v102
    %v204 = vpack.c.bf16 %v105, %v104
    %v205 = vpack.c.bf16 %v107, %v106
    %v206 = vpack.c.bf16 %v109, %v108
    %v207 = vpack.c.bf16 %v111, %v110
    %v208 = vpack.c.bf16 %v113, %v112
    %v209 = vpack.c.bf16 %v115, %v114
    %v210 = vpack.c.bf16 %v117, %v116
    %v211 = vpack.c.bf16 %v119, %v118
    %v212 = vpack.c.bf16 %v121, %v120
    %v213 = vpack.c.bf16 %v123, %v122
    %v214 = vpack.c.bf16 %v125, %v124
    %v215 = vpack.c.bf16 %v127, %v126
    %v216 = vpack.c.bf16 %v129, %v128
    %v217 = vpack.c.bf16 %v131, %v130
    %v218 = vpack.c.bf16 %v133, %v132
    %v219 = vpack.c.bf16 %v135, %v134
    %v220 = vpack.c.bf16 %v137, %v136
    %v221 = vpack.c.bf16 %v139, %v138
    %v222 = vpack.c.bf16 %v141, %v140
    %v223 = vpack.c.bf16 %v143, %v142
    %v224 = vpack.c.bf16 %v145, %v144
    %v225 = vpack.c.bf16 %v147, %v146
    %v226 = vpack.c.bf16 %v149, %v148
    %v227 = vpack.c.bf16 %v151, %v150
    %v228 = vpack.c.bf16 %v153, %v152
    %v229 = vpack.c.bf16 %v155, %v154
    %v230 = vpack.c.bf16 %v157, %v156
    %v231 = vpack.c.bf16 %v159, %v158
    %v232 = vpack.c.bf16 %v161, %v160
    %v233 = vpack.c.bf16 %v163, %v162
    %v234 = vpack.c.bf16 %v165, %v164
    %v235 = vpack.c.bf16 %v167, %v166
    %v236 = vpack.c.bf16 %v169, %v168
    %v237 = vpack.c.bf16 %v171, %v170
    %v238 = vpack.c.bf16 %v173, %v172
    %v239 = vpack.c.bf16 %v175, %v174
    %v240 = vpack.c.bf16 %v177, %v176
    %v241 = vpack.c.bf16 %v178, %v178
    %v242 = vld [vmem:[%s2] sm:$0x1]
    %v244 = vperm.slane %v242, 0
    %vm246 = vcmask 850944
    %v248 = vsel %vm246, %v53, 0
    %vm250 = vcmask 1043456
    %v252 = vsel %vm250, %v241, 0
    %254 = vmatpush.bf16.msra.mxu0 %v186
    %255 = vmatpush.bf16.msra.mxu0 %v185
    %256 = vmatpush.bf16.msra.mxu0 %v184
    %257 = vmatpush.bf16.msra.mxu0 %v183
    %258 = vmatpush.bf16.msra.mxu0 %v182
    %259 = vmatpush.bf16.msra.mxu0 %v181
    %260 = vmatpush.bf16.msra.mxu0 %v180
    %261 = vmatpush.bf16.msra.mxu0 %v179
    %262 = vmatmul.bf16.gmra.mxu0 %v46
    %v263 = vpop.f32.mrf.mxu0
    %v264 = vadd.f32 %v244, %v263
    %v265 = vpop.f32.mrf.mxu0
    %266 = vdwg.mxu0
    %267 = vmatpush.bf16.msra.mxu0 %v194
    %268 = vmatpush.bf16.msra.mxu0 %v193
    %269 = vmatpush.bf16.msra.mxu0 %v192
    %270 = vmatpush.bf16.msra.mxu0 %v191
    %271 = vmatpush.bf16.msra.mxu0 %v190
    %272 = vmatpush.bf16.msra.mxu0 %v189
    %273 = vmatpush.bf16.msra.mxu0 %v188
    %274 = vmatpush.bf16.msra.mxu0 %v187
    %275 = vmatmul.bf16.gmra.mxu0 %v47
    %v276 = vpop.f32.mrf.mxu0
    %v277 = vadd.f32 %v264, %v276
    %v278 = vpop.f32.mrf.mxu0
    %279 = vdwg.mxu0
    %280 = vmatpush.bf16.msra.mxu0 %v202
    %281 = vmatpush.bf16.msra.mxu0 %v201
    %282 = vmatpush.bf16.msra.mxu0 %v200
    %283 = vmatpush.bf16.msra.mxu0 %v199
    %284 = vmatpush.bf16.msra.mxu0 %v198
    %285 = vmatpush.bf16.msra.mxu0 %v197
    %286 = vmatpush.bf16.msra.mxu0 %v196
    %287 = vmatpush.bf16.msra.mxu0 %v195
    %288 = vmatmul.bf16.gmra.mxu0 %v48
    %v289 = vpop.f32.mrf.mxu0
    %v290 = vadd.f32 %v277, %v289
    %v291 = vpop.f32.mrf.mxu0
    %292 = vdwg.mxu0
    %293 = vmatpush.bf16.msra.mxu0 %v210
    %294 = vmatpush.bf16.msra.mxu0 %v209
    %295 = vmatpush.bf16.msra.mxu0 %v208
    %296 = vmatpush.bf16.msra.mxu0 %v207
    %297 = vmatpush.bf16.msra.mxu0 %v206
    %298 = vmatpush.bf16.msra.mxu0 %v205
    %299 = vmatpush.bf16.msra.mxu0 %v204
    %300 = vmatpush.bf16.msra.mxu0 %v203
    %301 = vmatmul.bf16.gmra.mxu0 %v49
    %v302 = vpop.f32.mrf.mxu0
    %v303 = vadd.f32 %v290, %v302
    %v304 = vpop.f32.mrf.mxu0
    %305 = vdwg.mxu0
    %306 = vmatpush.bf16.msra.mxu0 %v218
    %307 = vmatpush.bf16.msra.mxu0 %v217
    %308 = vmatpush.bf16.msra.mxu0 %v216
    %309 = vmatpush.bf16.msra.mxu0 %v215
    %310 = vmatpush.bf16.msra.mxu0 %v214
    %311 = vmatpush.bf16.msra.mxu0 %v213
    %312 = vmatpush.bf16.msra.mxu0 %v212
    %313 = vmatpush.bf16.msra.mxu0 %v211
    %314 = vmatmul.bf16.gmra.mxu0 %v50
    %v315 = vpop.f32.mrf.mxu0
    %v316 = vadd.f32 %v303, %v315
    %v317 = vpop.f32.mrf.mxu0
    %318 = vdwg.mxu0
    %319 = vmatpush.bf16.msra.mxu0 %v226
    %320 = vmatpush.bf16.msra.mxu0 %v225
    %321 = vmatpush.bf16.msra.mxu0 %v224
    %322 = vmatpush.bf16.msra.mxu0 %v223
    %323 = vmatpush.bf16.msra.mxu0 %v222
    %324 = vmatpush.bf16.msra.mxu0 %v221
    %325 = vmatpush.bf16.msra.mxu0 %v220
    %326 = vmatpush.bf16.msra.mxu0 %v219
    %327 = vmatmul.bf16.gmra.mxu0 %v51
    %v328 = vpop.f32.mrf.mxu0
    %v329 = vadd.f32 %v316, %v328
    %v330 = vpop.f32.mrf.mxu0
    %331 = vdwg.mxu0
    %332 = vmatpush.bf16.msra.mxu0 %v234
    %333 = vmatpush.bf16.msra.mxu0 %v233
    %334 = vmatpush.bf16.msra.mxu0 %v232
    %335 = vmatpush.bf16.msra.mxu0 %v231
    %336 = vmatpush.bf16.msra.mxu0 %v230
    %337 = vmatpush.bf16.msra.mxu0 %v229
    %338 = vmatpush.bf16.msra.mxu0 %v228
    %339 = vmatpush.bf16.msra.mxu0 %v227
    %340 = vmatmul.bf16.gmra.mxu0 %v52
    %v341 = vpop.f32.mrf.mxu0
    %v342 = vadd.f32 %v329, %v341
    %v343 = vpop.f32.mrf.mxu0
    %344 = vdwg.mxu0
    %345 = vmatpush.bf16.msra.mxu0 0
    %346 = vmatpush.bf16.msra.mxu0 %v252
    %347 = vmatpush.bf16.msra.mxu0 %v240
    %348 = vmatpush.bf16.msra.mxu0 %v239
    %349 = vmatpush.bf16.msra.mxu0 %v238
    %350 = vmatpush.bf16.msra.mxu0 %v237
    %351 = vmatpush.bf16.msra.mxu0 %v236
    %352 = vmatpush.bf16.msra.mxu0 %v235
    %353 = vmatmul.bf16.gmra.mxu0 %v248
    %v354 = vpop.f32.mrf.mxu0
    %v355 = vadd.f32 %v342, %v354
    %v356 = vpop.f32.mrf.mxu0
    %357 = vdwg.mxu0
    %vm358 = vcmp.ge.f32.partialorder %v355, 0.0
    %v359 = vmul.f32 %v355, 0.2
    %v360 = vsel %vm358, %v355, %v359
    %v361 = vpack.c.bf16 %v360, %v360
    %v362 = vld [vmem:[%s3] sm:$0xff]
    %v363 = vld [vmem:[%s3 + $0x8] sm:$0xff]
    %v364 = vld [vmem:[%s3 + $0x10] sm:$0xff]
    %v365 = vld [vmem:[%s3 + $0x18] sm:$0xff]
    %v366 = vld [vmem:[%s3 + $0x20] sm:$0xff]
    %v367 = vld [vmem:[%s3 + $0x28] sm:$0xff]
    %v368 = vld [vmem:[%s3 + $0x30] sm:$0xff]
    %v369 = vld [vmem:[%s3 + $0x38] sm:$0xff]
    %v370 = vld [vmem:[%s3 + $0x40] sm:$0xff]
    %v371 = vld [vmem:[%s3 + $0x48] sm:$0xff]
    %v372 = vld [vmem:[%s3 + $0x50] sm:$0xff]
    %v373 = vld [vmem:[%s3 + $0x58] sm:$0xff]
    %v374 = vld [vmem:[%s3 + $0x60] sm:$0xff]
    %v375 = vld [vmem:[%s3 + $0x68] sm:$0xff]
    %v376 = vld [vmem:[%s3 + $0x70] sm:$0xff]
    %v377 = vld [vmem:[%s3 + $0x78] sm:$0xff]
    %v378 = vpack.c.bf16 %v363, %v362
    %v379 = vpack.c.bf16 %v365, %v364
    %v380 = vpack.c.bf16 %v367, %v366
    %v381 = vpack.c.bf16 %v369, %v368
    %v382 = vpack.c.bf16 %v371, %v370
    %v383 = vpack.c.bf16 %v373, %v372
    %v384 = vpack.c.bf16 %v375, %v374
    %v385 = vpack.c.bf16 %v377, %v376
    %v386 = vld [vmem:[%s4] sm:$0x1]
    %v388 = vperm.slane %v386, 0
    %390 = vmatpush.bf16.msra.mxu0 %v385
    %391 = vmatpush.bf16.msra.mxu0 %v384
    %392 = vmatpush.bf16.msra.mxu0 %v383
    %393 = vmatpush.bf16.msra.mxu0 %v382
    %394 = vmatpush.bf16.msra.mxu0 %v381
    %395 = vmatpush.bf16.msra.mxu0 %v380
    %396 = vmatpush.bf16.msra.mxu0 %v379
    %397 = vmatpush.bf16.msra.mxu0 %v378
    %398 = vmatmul.bf16.gmra.mxu0 %v361
    %v399 = vpop.f32.mrf.mxu0
    %v400 = vadd.f32 %v388, %v399
    %v401 = vpop.f32.mrf.mxu0
    %402 = vdwg.mxu0
    %vm403 = vcmp.ge.f32.partialorder %v400, 0.0
    %v404 = vmul.f32 %v400, 0.2
    %v405 = vsel %vm403, %v400, %v404
    %vm406 = vcmask 261120
    %407 = vst.msk [vmem:[#allocation5] sm:$0xff] %vm406, %v405
    // Predicated region
    $region26: #{tpu_custom_call.1} parent=1 // pred_check
      _
    $region27: #{tpu_custom_call.1} parent=1 // pred_check_branch
      %409 = sbr.rel (0) target = $region29
    $region28: #{tpu_custom_call.1} parent=1 // pred_region
      %411 = vsyncadd [#allocation4], 0
      %s413 = sshll.u32 [#allocation5], 4
      %s414 = int_to_ptr.vmem [resolvable:$true] %s413
      %s415 = sshll.u32 %s5, 4
      %s416 = int_to_ptr.hbm [resolvable:$true] %s415
      %418 = dma.vmem_to_hbm [thread:$0]  %s414, 128, %s416, [#allocation4]
    $region29: #{tpu_custom_call.1} parent=1 // pred_fallthru
      _
    // Predicated region
    $region30: #{tpu_custom_call.1} parent=1 // pred_check
      _
    $region31: #{tpu_custom_call.1} parent=1 // pred_check_branch
      %420 = sbr.rel (0) target = $region33
    $region32: #{tpu_custom_call.1} parent=1 // pred_region
      %422 = dma.done [#allocation4], 128
    $region33: #{tpu_custom_call.1} parent=1 // pred_fallthru
      _
    %423 = vsyncpa [#allocation3], 1
    %424 = vsyncpa [#allocation4], 1

</llo_original>
